<compile_context>
chip_gen: v6e
topology: v6e:2x2x1
jax: 0.10.0
libtpu: 0.0.40
codegen_flags: <defaults>
</compile_context>

<pallas_src>
import functools

import jax
import jax.numpy as jnp
import numpy as np
from jax import lax
from jax.experimental import pallas as pl
from jax.experimental.pallas import tpu as pltpu

_LANES = 128


def _mseauc_kernel(y_ref, lam_ref, xhat_ref, xtrue_ref,
                   mean_ref, pen_ref, na_ref, acc_ref,
                   *, total_features, batch, tile_features):
    """Grid axis 0 tiles the (flattened, zero-padded) feature dimension."""
    k = pl.program_id(0)

    @pl.when(k == 0)
    def _():
        acc_ref[...] = jnp.zeros_like(acc_ref)

    # Per-lane partial SSE: loop over 128-lane chunks of this tile with static,
    # vreg-aligned slices.  Pure VALU adds; no cross-lane reduce in steady state.
    nchunks = tile_features // _LANES
    partial = jnp.zeros((batch, _LANES), jnp.float32)
    for c in range(nchunks):
        lo = c * _LANES
        xh = xhat_ref[:, lo:lo + _LANES].astype(jnp.float32)
        xt = xtrue_ref[:, lo:lo + _LANES].astype(jnp.float32)
        d = xh - xt
        partial = partial + d * d
    acc_ref[...] += partial

    @pl.when(k == pl.num_programs(0) - 1)
    def _():
        # Single cross-lane reduce at the very end.
        sse = jnp.sum(acc_ref[...], axis=1, keepdims=True)            # (B, 1)
        err = sse * (1.0 / float(total_features))                      # (B, 1)
        mean_loss = jnp.sum(err) * (1.0 / float(batch))                # scalar

        y = y_ref[...]                                                 # (B, 1) int32
        mask_n = (y == 1).astype(jnp.float32)                          # normals
        mask_a = (y > 1).astype(jnp.float32)                           # anomalies
        n_n = jnp.sum(mask_n)
        n_a = jnp.sum(mask_a)

        # Batched (B, B) pairwise penalty (no per-row Python loop / per-row EUP
        # pushes).  Column -> row relayout done with a diagonal-mask sublane
        # reduce instead of an in-kernel transpose.
        rows = lax.broadcasted_iota(jnp.int32, (batch, batch), 0)
        cols = lax.broadcasted_iota(jnp.int32, (batch, batch), 1)
        eye = (rows == cols).astype(jnp.float32)                       # (B, B)
        err_row = jnp.sum(err * eye, axis=0, keepdims=True)            # (1, B)
        mask_n_row = jnp.sum(mask_n * eye, axis=0, keepdims=True)      # (1, B)

        diff = err - err_row                                           # (B, B): err[i]-err[j]
        sig = pl.reciprocal(1.0 + jnp.exp(-diff), approx=True)         # EUP-only sigmoid
        pair_mask = mask_a * mask_n_row                                # anomaly-i x normal-j
        sig_sum = jnp.sum(pair_mask * sig)

        lam = lam_ref[0, 0]
        # NOTE: reference divides by n_a*n_n unguarded (inf/nan if anomalies
        # exist but no normals); we clamp the denominator as a hardening choice.
        denom = jnp.maximum(n_a * n_n, 1.0)
        auc = jnp.where(n_a > 0.0, lam * sig_sum / denom, 0.0)

        mean_ref[0, 0] = mean_loss
        pen_ref[0, 0] = mean_loss + auc
        na_ref[0, 0] = n_a


def _pick_tile(batch, f128, itemsize):
    """Largest 128-multiple feature tile that fits a generation-aware VMEM budget."""
    try:
        vmem_cap = int(pltpu.get_tpu_info().vmem_capacity_bytes)
    except Exception:
        vmem_cap = 64 << 20  # conservative per-TC default (v7x)
    budget = vmem_cap // 8  # 2 inputs x 2 pipeline buffers must sit well inside this
    tf_budget = budget // max(1, 2 * 2 * batch * itemsize)
    tf_budget = max(_LANES, (tf_budget // _LANES) * _LANES)
    max_unroll = 64 * _LANES  # cap static chunk unroll inside the kernel body
    return int(min(f128, tf_budget, max_unroll)), vmem_cap


def mseauc_loss_parts(x_hat, x_true, y, lambda_auc):
    """Jittable core. Returns (penalized_loss, mean_loss, n_anomaly) as scalars."""
    B = x_hat.shape[0]
    F = int(np.prod(x_hat.shape[1:]))
    # Keep native dtype (e.g. bf16) -> halves streamed HBM bytes; cast in-kernel.
    xh = jnp.reshape(x_hat, (B, F))
    xt = jnp.reshape(x_true, (B, F))
    y2 = jnp.reshape(y, (B, 1)).astype(jnp.int32)
    lam = jnp.asarray(lambda_auc, jnp.float32).reshape(1, 1)

    itemsize = max(jnp.dtype(xh.dtype).itemsize, jnp.dtype(xt.dtype).itemsize)
    f128 = ((F + _LANES - 1) // _LANES) * _LANES
    TF, vmem_cap = _pick_tile(B, f128, itemsize)
    F_pad = ((f128 + TF - 1) // TF) * TF      # zero padding contributes 0 to SSE
    if F_pad != F:
        xh = jnp.pad(xh, ((0, 0), (0, F_pad - F)))
        xt = jnp.pad(xt, ((0, 0), (0, F_pad - F)))
    grid = (F_pad // TF,)

    # Raise the scoped VMEM limit only if the pipelined footprint needs it.
    needed = 2 * 2 * B * TF * itemsize + B * _LANES * 4 + (1 << 20)
    vmem_limit = None
    if needed > (16 << 20):
        vmem_limit = int(max(needed, min(vmem_cap - (8 << 20), needed * 2)))

    kernel = functools.partial(_mseauc_kernel, total_features=F, batch=B,
                               tile_features=TF)

    mean_out, pen_out, na_out = pl.pallas_call(
        kernel,
        out_shape=(jax.ShapeDtypeStruct((1, 1), jnp.float32),
                   jax.ShapeDtypeStruct((1, 1), jnp.float32),
                   jax.ShapeDtypeStruct((1, 1), jnp.float32)),
        grid_spec=pltpu.PrefetchScalarGridSpec(
            num_scalar_prefetch=0,
            grid=grid,
            in_specs=[
                pl.BlockSpec((B, 1), lambda k: (0, 0)),                 # y (VMEM)
                pl.BlockSpec(memory_space=pltpu.MemorySpace.SMEM),      # lambda_auc
                pl.BlockSpec((B, TF), lambda k: (0, k)),                # x_hat tile
                pl.BlockSpec((B, TF), lambda k: (0, k)),                # x_true tile
            ],
            out_specs=(
                pl.BlockSpec(memory_space=pltpu.MemorySpace.SMEM),      # mean_loss
                pl.BlockSpec(memory_space=pltpu.MemorySpace.SMEM),      # penalized_loss
                pl.BlockSpec(memory_space=pltpu.MemorySpace.SMEM),      # n_anomaly
            ),
            scratch_shapes=[pltpu.VMEM((B, _LANES), jnp.float32)],      # per-lane SSE acc
        ),
        compiler_params=pltpu.CompilerParams(
            dimension_semantics=("arbitrary",),
            vmem_limit_bytes=vmem_limit),
    )(y2, lam, xh, xt)

    return pen_out[0, 0], mean_out[0, 0], na_out[0, 0]


def mseauc_loss(x_hat, x_true, y, lambda_auc):
    """Matches MSEAUC_approx semantics: (penalized, mean) if any y > 1 else mean.

    The jittable work lives in mseauc_loss_parts; only the data-dependent
    return STRUCTURE (tuple vs scalar, inherent to the PyTorch reference)
    requires a single host-side check after all device compute.
    """
    pen, mean, n_a = mseauc_loss_parts(x_hat, x_true, y, lambda_auc)
    if float(n_a) > 0.0:
        return pen, mean
    return mean


def _reference(x_hat, x_true, y, lam):
    x_hat = np.asarray(x_hat, np.float32)
    x_true = np.asarray(x_true, np.float32)
    y = np.asarray(y)
    err = ((x_hat - x_true) ** 2).mean(axis=(1, 2))
    err_n = err[y == 1]
    err_a = err[y > 1]
    n_a, n_n = err_a.shape[0], err_n.shape[0]
    mean_loss = err.mean()
    if n_a > 0:
        diff = err_a[:, None] - err_n[None, :]
        sig = 1.0 / (1.0 + np.exp(-diff))
        auc = lam * sig.sum() / (n_a * n_n)
        return mean_loss + auc, mean_loss
    return mean_loss


if __name__ == "__main__":
    key = jax.random.PRNGKey(0)
    k1, k2 = jax.random.split(key)

    B, D1, D2 = 8, 16, 16
    x_hat = jax.random.normal(k1, (B, D1, D2), jnp.float32)
    x_true = jax.random.normal(k2, (B, D1, D2), jnp.float32)
    # labels: 1 == normal, >1 == anomaly
    y = jnp.array([1, 2, 1, 1, 3, 1, 2, 1], dtype=jnp.int32)
    lambda_auc = 0.5

    out = mseauc_loss(x_hat, x_true, y, lambda_auc)
    out = jax.block_until_ready(out)
    pen, mean = out

    ref_pen, ref_mean = _reference(x_hat, x_true, y, lambda_auc)
    np.testing.assert_allclose(float(pen), float(ref_pen), rtol=2e-3)
    np.testing.assert_allclose(float(mean), float(ref_mean), rtol=1e-4)

    # Also exercise the no-anomaly path (scalar return, as in the PyTorch ref).
    y_norm = jnp.ones((B,), jnp.int32)
    out2 = jax.block_until_ready(mseauc_loss(x_hat, x_true, y_norm, lambda_auc))
    np.testing.assert_allclose(float(out2), float(ref_mean), rtol=1e-4)

    print("KERNEL_OK")
</pallas_src>

<mosaic_0001>
module attributes {stable_mosaic.version = 11 : i64} {
  func.func @_mseauc_kernel(%arg0: i32, %arg1: memref<8x1xi32, #tpu.memory_space<vmem>>, %arg2: memref<1x1xf32, #tpu.memory_space<smem>>, %arg3: memref<8x256xf32, #tpu.memory_space<vmem>>, %arg4: memref<8x256xf32, #tpu.memory_space<vmem>>, %arg5: memref<1x1xf32, #tpu.memory_space<smem>>, %arg6: memref<1x1xf32, #tpu.memory_space<smem>>, %arg7: memref<1x1xf32, #tpu.memory_space<smem>>, %arg8: memref<8x128xf32, #tpu.memory_space<vmem>>) attributes {dimension_semantics = [#tpu.dimension_semantics<arbitrary>], iteration_bounds = array<i64: 1>, scalar_prefetch = 0 : i64, scratch_operands = 1 : i64, tpu.core_type = #tpu.core_type<tc>, window_params = [{pipeline_mode = #tpu.pipeline_mode<synchronous>, transform_indices = @transform_0, window_bounds = array<i64: 8, 1>}, {transform_indices = @transform_1, window_bounds = array<i64: 1, 1>}, {transform_indices = @transform_2, window_bounds = array<i64: 8, 256>}, {transform_indices = @transform_3, window_bounds = array<i64: 8, 256>}, {transform_indices = @transform_4, window_bounds = array<i64: 1, 1>}, {transform_indices = @transform_5, window_bounds = array<i64: 1, 1>}, {transform_indices = @transform_6, window_bounds = array<i64: 1, 1>}]} {
    %c0_i32 = arith.constant 0 : i32
    %0 = arith.cmpi eq, %arg0, %c0_i32 : i32
    %1 = arith.extui %0 : i1 to i32
    %c0_i32_0 = arith.constant 0 : i32
    %2 = arith.cmpi ne, %1, %c0_i32_0 : i32
    scf.if %2 {
      %cst_13 = arith.constant 0.000000e+00 : f32
      %20 = vector.broadcast %cst_13 : f32 to vector<8x128xf32>
      %c0_14 = arith.constant 0 : index
      %c0_15 = arith.constant 0 : index
      %21 = vector.load %arg8[%c0_14, %c0_15] : memref<8x128xf32, #tpu.memory_space<vmem>>, vector<8x128xf32>
      tpu.vector_store %arg8[%c0_14, %c0_15], %20 {strides = array<i32>} : memref<8x128xf32, #tpu.memory_space<vmem>>, vector<8x128xf32>,
    } else {
    }
    %cst = arith.constant 0.000000e+00 : f32
    %3 = vector.broadcast %cst : f32 to vector<8x128xf32>
    %c0 = arith.constant 0 : index
    %c0_1 = arith.constant 0 : index
    %4 = vector.load %arg3[%c0, %c0_1] : memref<8x256xf32, #tpu.memory_space<vmem>>, vector<8x128xf32>
    %c0_2 = arith.constant 0 : index
    %c0_3 = arith.constant 0 : index
    %5 = vector.load %arg4[%c0_2, %c0_3] : memref<8x256xf32, #tpu.memory_space<vmem>>, vector<8x128xf32>
    %6 = arith.subf %4, %5 : vector<8x128xf32>
    %7 = arith.mulf %6, %6 : vector<8x128xf32>
    %8 = arith.addf %3, %7 : vector<8x128xf32>
    %c0_4 = arith.constant 0 : index
    %c128 = arith.constant 128 : index
    %9 = vector.load %arg3[%c0_4, %c128] : memref<8x256xf32, #tpu.memory_space<vmem>>, vector<8x128xf32>
    %c0_5 = arith.constant 0 : index
    %c128_6 = arith.constant 128 : index
    %10 = vector.load %arg4[%c0_5, %c128_6] : memref<8x256xf32, #tpu.memory_space<vmem>>, vector<8x128xf32>
    %11 = arith.subf %9, %10 : vector<8x128xf32>
    %12 = arith.mulf %11, %11 : vector<8x128xf32>
    %13 = arith.addf %8, %12 : vector<8x128xf32>
    %c0_7 = arith.constant 0 : index
    %c0_8 = arith.constant 0 : index
    %14 = vector.load %arg8[%c0_7, %c0_8] : memref<8x128xf32, #tpu.memory_space<vmem>>, vector<8x128xf32>
    %15 = arith.addf %14, %13 : vector<8x128xf32>
    %c0_9 = arith.constant 0 : index
    %c0_10 = arith.constant 0 : index
    %16 = vector.load %arg8[%c0_9, %c0_10] : memref<8x128xf32, #tpu.memory_space<vmem>>, vector<8x128xf32>
    tpu.vector_store %arg8[%c0_9, %c0_10], %15 {strides = array<i32>} : memref<8x128xf32, #tpu.memory_space<vmem>>, vector<8x128xf32>,
    %c0_i32_11 = arith.constant 0 : i32
    %17 = arith.cmpi eq, %arg0, %c0_i32_11 : i32
    %18 = arith.extui %17 : i1 to i32
    %c0_i32_12 = arith.constant 0 : i32
    %19 = arith.cmpi ne, %18, %c0_i32_12 : i32
    scf.if %19 {
      %c0_13 = arith.constant 0 : index
      %c0_14 = arith.constant 0 : index
      %20 = vector.load %arg8[%c0_13, %c0_14] : memref<8x128xf32, #tpu.memory_space<vmem>>, vector<8x128xf32>
      %cst_15 = arith.constant dense<0.000000e+00> : vector<8xf32>
      %21 = vector.multi_reduction <add>, %20, %cst_15 [1] : vector<8x128xf32> to vector<8xf32>
      %22 = vector.shape_cast %21 : vector<8xf32> to vector<8x1xf32>
      %cst_16 = arith.constant 3.906250e-03 : f32
      %23 = vector.broadcast %cst_16 : f32 to vector<8x1xf32>
      %24 = arith.mulf %22, %23 : vector<8x1xf32>
      %25 = vector.shape_cast %24 : vector<8x1xf32> to vector<1x8x1xf32>
      %cst_17 = arith.constant dense<0.000000e+00> : vector<1xf32>
      %26 = vector.multi_reduction <add>, %25, %cst_17 [1, 2] : vector<1x8x1xf32> to vector<1xf32>
      %27 = vector.shape_cast %26 : vector<1xf32> to vector<1x1x1xf32>
      %28 = vector.extract %27[0, 0, 0] : f32 from vector<1x1x1xf32>
      %cst_18 = arith.constant 1.250000e-01 : f32
      %29 = arith.mulf %28, %cst_18 : f32
      %c0_19 = arith.constant 0 : index
      %c0_20 = arith.constant 0 : index
      %30 = vector.load %arg1[%c0_19, %c0_20] : memref<8x1xi32, #tpu.memory_space<vmem>>, vector<8x1xi32>
      %c1_i32 = arith.constant 1 : i32
      %31 = vector.broadcast %c1_i32 : i32 to vector<8x1xi32>
      %32 = arith.cmpi eq, %30, %31 : vector<8x1xi32>
      %33 = arith.extui %32 : vector<8x1xi1> to vector<8x1xi32>
      %34 = arith.sitofp %33 : vector<8x1xi32> to vector<8x1xf32>
      %c1_i32_21 = arith.constant 1 : i32
      %35 = vector.broadcast %c1_i32_21 : i32 to vector<8x1xi32>
      %36 = arith.cmpi sgt, %30, %35 : vector<8x1xi32>
      %37 = arith.extui %36 : vector<8x1xi1> to vector<8x1xi32>
      %38 = arith.sitofp %37 : vector<8x1xi32> to vector<8x1xf32>
      %39 = vector.shape_cast %34 : vector<8x1xf32> to vector<1x8x1xf32>
      %cst_22 = arith.constant dense<0.000000e+00> : vector<1xf32>
      %40 = vector.multi_reduction <add>, %39, %cst_22 [1, 2] : vector<1x8x1xf32> to vector<1xf32>
      %41 = vector.shape_cast %40 : vector<1xf32> to vector<1x1x1xf32>
      %42 = vector.extract %41[0, 0, 0] : f32 from vector<1x1x1xf32>
      %43 = vector.shape_cast %38 : vector<8x1xf32> to vector<1x8x1xf32>
      %cst_23 = arith.constant dense<0.000000e+00> : vector<1xf32>
      %44 = vector.multi_reduction <add>, %43, %cst_23 [1, 2] : vector<1x8x1xf32> to vector<1xf32>
      %45 = vector.shape_cast %44 : vector<1xf32> to vector<1x1x1xf32>
      %46 = vector.extract %45[0, 0, 0] : f32 from vector<1x1x1xf32>
      %47 = tpu.iota {dimensions = array<i32: 0>} : vector<8x8xi32>
      %48 = tpu.iota {dimensions = array<i32: 1>} : vector<8x8xi32>
      %49 = arith.cmpi eq, %47, %48 : vector<8x8xi32>
      %50 = arith.extui %49 : vector<8x8xi1> to vector<8x8xi32>
      %51 = arith.sitofp %50 : vector<8x8xi32> to vector<8x8xf32>
      %52 = vector.broadcast %24 : vector<8x1xf32> to vector<8x8xf32>
      %53 = arith.mulf %52, %51 : vector<8x8xf32>
      %cst_24 = arith.constant dense<0.000000e+00> : vector<8xf32>
      %54 = vector.multi_reduction <add>, %53, %cst_24 [0] : vector<8x8xf32> to vector<8xf32>
      %55 = vector.shape_cast %54 : vector<8xf32> to vector<1x8xf32>
      %56 = vector.broadcast %34 : vector<8x1xf32> to vector<8x8xf32>
      %57 = arith.mulf %56, %51 : vector<8x8xf32>
      %cst_25 = arith.constant dense<0.000000e+00> : vector<8xf32>
      %58 = vector.multi_reduction <add>, %57, %cst_25 [0] : vector<8x8xf32> to vector<8xf32>
      %59 = vector.shape_cast %58 : vector<8xf32> to vector<1x8xf32>
      %60 = vector.broadcast %24 : vector<8x1xf32> to vector<8x8xf32>
      %61 = vector.broadcast %55 : vector<1x8xf32> to vector<8x8xf32>
      %62 = arith.subf %60, %61 : vector<8x8xf32>
      %cst_26 = arith.constant 0.000000e+00 : f32
      %63 = vector.broadcast %cst_26 : f32 to vector<8x8xf32>
      %64 = arith.subf %63, %62 : vector<8x8xf32>
      %65 = math.exp %64 : vector<8x8xf32>
      %cst_27 = arith.constant 1.000000e+00 : f32
      %66 = vector.broadcast %cst_27 : f32 to vector<8x8xf32>
      %67 = arith.addf %66, %65 : vector<8x8xf32>
      %68 = tpu.reciprocal %67 {approx = true} : vector<8x8xf32> -> vector<8x8xf32>
      %69 = vector.broadcast %38 : vector<8x1xf32> to vector<8x8xf32>
      %70 = vector.broadcast %59 : vector<1x8xf32> to vector<8x8xf32>
      %71 = arith.mulf %69, %70 : vector<8x8xf32>
      %72 = arith.mulf %71, %68 : vector<8x8xf32>
      %73 = vector.shape_cast %72 : vector<8x8xf32> to vector<1x8x8xf32>
      %cst_28 = arith.constant dense<0.000000e+00> : vector<1xf32>
      %74 = vector.multi_reduction <add>, %73, %cst_28 [1, 2] : vector<1x8x8xf32> to vector<1xf32>
      %75 = vector.shape_cast %74 : vector<1xf32> to vector<1x1x1xf32>
      %76 = vector.extract %75[0, 0, 0] : f32 from vector<1x1x1xf32>
      %c0_29 = arith.constant 0 : index
      %c0_30 = arith.constant 0 : index
      %77 = memref.load %arg2[%c0_29, %c0_30] : memref<1x1xf32, #tpu.memory_space<smem>>
      %78 = arith.mulf %46, %42 : f32
      %cst_31 = arith.constant 1.000000e+00 : f32
      %79 = arith.maximumf %78, %cst_31 : f32
      %cst_32 = arith.constant 0.000000e+00 : f32
      %80 = arith.cmpf ogt, %46, %cst_32 : f32
      %81 = arith.mulf %77, %76 : f32
      %82 = arith.divf %81, %79 : f32
      %cst_33 = arith.constant 0.000000e+00 : f32
      %83 = arith.select %80, %82, %cst_33 : f32
      %c0_34 = arith.constant 0 : index
      %c0_35 = arith.constant 0 : index
      %84 = memref.load %arg5[%c0_34, %c0_35] : memref<1x1xf32, #tpu.memory_space<smem>>
      memref.store %29, %arg5[%c0_34, %c0_35] : memref<1x1xf32, #tpu.memory_space<smem>>
      %85 = arith.addf %29, %83 : f32
      %c0_36 = arith.constant 0 : index
      %c0_37 = arith.constant 0 : index
      %86 = memref.load %arg6[%c0_36, %c0_37] : memref<1x1xf32, #tpu.memory_space<smem>>
      memref.store %85, %arg6[%c0_36, %c0_37] : memref<1x1xf32, #tpu.memory_space<smem>>
      %c0_38 = arith.constant 0 : index
      %c0_39 = arith.constant 0 : index
      %87 = memref.load %arg7[%c0_38, %c0_39] : memref<1x1xf32, #tpu.memory_space<smem>>
      memref.store %46, %arg7[%c0_38, %c0_39] : memref<1x1xf32, #tpu.memory_space<smem>>
    } else {
    }
    return
  }
  func.func @transform_0(%arg0: i32) -> (i32, i32) {
    %c0_i32 = arith.constant 0 : i32
    %c0_i32_0 = arith.constant 0 : i32
    %c0_i32_1 = arith.constant 0 : i32
    return %c0_i32, %c0_i32_0 : i32, i32
  }
  func.func @transform_1(%arg0: i32) -> (i32, i32) {
    %c0_i32 = arith.constant 0 : i32
    %c0_i32_0 = arith.constant 0 : i32
    %c0_i32_1 = arith.constant 0 : i32
    return %c0_i32, %c0_i32_0 : i32, i32
  }
  func.func @transform_2(%arg0: i32) -> (i32, i32) {
    %c0_i32 = arith.constant 0 : i32
    %c0_i32_0 = arith.constant 0 : i32
    return %c0_i32, %arg0 : i32, i32
  }
  func.func @transform_3(%arg0: i32) -> (i32, i32) {
    %c0_i32 = arith.constant 0 : i32
    %c0_i32_0 = arith.constant 0 : i32
    return %c0_i32, %arg0 : i32, i32
  }
  func.func @transform_4(%arg0: i32) -> (i32, i32) {
    %c0_i32 = arith.constant 0 : i32
    %c0_i32_0 = arith.constant 0 : i32
    %c0_i32_1 = arith.constant 0 : i32
    return %c0_i32, %c0_i32_0 : i32, i32
  }
  func.func @transform_5(%arg0: i32) -> (i32, i32) {
    %c0_i32 = arith.constant 0 : i32
    %c0_i32_0 = arith.constant 0 : i32
    %c0_i32_1 = arith.constant 0 : i32
    return %c0_i32, %c0_i32_0 : i32, i32
  }
  func.func @transform_6(%arg0: i32) -> (i32, i32) {
    %c0_i32 = arith.constant 0 : i32
    %c0_i32_0 = arith.constant 0 : i32
    %c0_i32_1 = arith.constant 0 : i32
    return %c0_i32, %c0_i32_0 : i32, i32
  }
}

</mosaic_0001>

<llo_original>
// kernel: tpu_custom_call.1
$region0: #{tpu_custom_call.1}
  #allocation0 [shape = 'u32[]', space=smem, size = 0x4, offset = 0x4, fixed_abs, tag = 'smem constant byte address 0x4 - core index']
  #allocation1 [shape = 'u32[144,128]{1,0:T(1,128)}', space=vmem, size = 0x12000, scoped, tag = 'internal scratch']
  #allocation2 [shape = 'f32[8,128]{1,0:T(8,128)}', space=vmem, size = 0x1000, scoped, tag = 'scratch operand']
  #allocation3 [shape = 'f32[1,1]{1,0:T(1,128)S(6)}', space=smem, size = 0x200, scoped, tag = 'scoped memory for tpu_custom_call.1']
  %s0 = inlined_call_operand.vmem [shape: s32[8,1], index: 0, kind: input, shape index: {}]
  %s1 = inlined_call_operand.<no memory space> [shape: f32[1,1], index: 1, kind: input, shape index: {}]
  %s2 = inlined_call_operand.hbm [shape: f32[8,256], index: 2, kind: input, shape index: {}]
  %s3 = inlined_call_operand.hbm [shape: f32[8,256], index: 3, kind: input, shape index: {}]
  %s4 = inlined_call_operand.hbm [shape: f32[1,1], index: 4, kind: output, shape index: {0}]
  %s5 = inlined_call_operand.hbm [shape: f32[1,1], index: 5, kind: output, shape index: {1}]
  %s6 = inlined_call_operand.hbm [shape: f32[1,1], index: 6, kind: output, shape index: {2}]
  %7 = xla_tuple %s4, %s5, %s6
  %s8 = sld [smem:[#allocation0]]
  $region58: #{tpu_custom_call.1} parent=0
    _
  %s10 = ssub.s32 1, %s8
  %s11 = scalar_select 0, %s10, %s8
  %12 = sst [smem:[#allocation3]] %s1
  $region1: #{tpu_custom_call.1} parent=0
    #allocation4 [shape = 'u8[8192]{0}', space=vmem, size = 0x2000, scoped, tag = 'input window, operand 2, single buffered']
    #allocation5 [shape = 's32[1]{0}', space=sflag, size = 0x4, scoped, tag = 'scoped memory for tpu_custom_call.1']
    #allocation6 [shape = 's32[1]{0}', space=sflag, size = 0x4, scoped, tag = 'scoped memory for tpu_custom_call.1']
    #allocation7 [shape = 'u8[8192]{0}', space=vmem, size = 0x2000, scoped, tag = 'input window, operand 3, single buffered']
    #allocation8 [shape = 's32[1]{0}', space=sflag, size = 0x4, scoped, tag = 'scoped memory for tpu_custom_call.1']
    #allocation9 [shape = 'u8[512]{0}', space=smem, size = 0x200, scoped, tag = 'output window, operand 0, single buffered']
    #allocation10 [shape = 'u8[512]{0}', space=smem, size = 0x200, scoped, tag = 'output window, operand 1, single buffered']
    #allocation11 [shape = 's32[1]{0}', space=sflag, size = 0x4, scoped, tag = 'scoped memory for tpu_custom_call.1']
    #allocation12 [shape = 'u8[512]{0}', space=smem, size = 0x200, scoped, tag = 'output window, operand 2, single buffered']
    %13 = vsyncpa [#allocation5], 0
    %14 = vsyncpa [#allocation8], 0
    %15 = vsyncpa [#allocation6], 0
    %16 = vsyncpa [#allocation11], 0
    // Predicated region
    $region2: #{tpu_custom_call.1} parent=1 // pred_check
      _
    $region3: #{tpu_custom_call.1} parent=1 // pred_check_branch
      %18 = sbr.rel (0) target = $region5
    $region4: #{tpu_custom_call.1} parent=1 // pred_region
      _
    $region5: #{tpu_custom_call.1} parent=1 // pred_fallthru
      _
    // Predicated region
    $region6: #{tpu_custom_call.1} parent=1 // pred_check
      _
    $region7: #{tpu_custom_call.1} parent=1 // pred_check_branch
      %20 = sbr.rel (0) target = $region9
    $region8: #{tpu_custom_call.1} parent=1 // pred_region
      _
    $region9: #{tpu_custom_call.1} parent=1 // pred_fallthru
      _
    // Predicated region
    $region10: #{tpu_custom_call.1} parent=1 // pred_check
      _
    $region11: #{tpu_custom_call.1} parent=1 // pred_check_branch
      %22 = sbr.rel (0) target = $region13
    $region12: #{tpu_custom_call.1} parent=1 // pred_region
      %s24 = ssub.s32 256, 256
      %25 = vsyncadd [#allocation5], %s24
      %s27 = sshll.u32 [#allocation4], 4
      %s28 = int_to_ptr.vmem [resolvable:$true] %s27
      %30 = dma.hbm_to_vmem [thread:$0]  %s2, 256, %s28, [#allocation5]
    $region13: #{tpu_custom_call.1} parent=1 // pred_fallthru
      _
    // Predicated region
    $region14: #{tpu_custom_call.1} parent=1 // pred_check
      _
    $region15: #{tpu_custom_call.1} parent=1 // pred_check_branch
      %32 = sbr.rel (0) target = $region17
    $region16: #{tpu_custom_call.1} parent=1 // pred_region
      %s34 = ssub.s32 256, 256
      %35 = vsyncadd [#allocation8], %s34
      %s37 = sshll.u32 [#allocation7], 4
      %s38 = int_to_ptr.vmem [resolvable:$true] %s37
      %40 = dma.hbm_to_vmem [thread:$0]  %s3, 256, %s38, [#allocation8]
    $region17: #{tpu_custom_call.1} parent=1 // pred_fallthru
      _
    // Predicated region
    $region18: #{tpu_custom_call.1} parent=1 // pred_check
      _
    $region19: #{tpu_custom_call.1} parent=1 // pred_check_branch
      %42 = sbr.rel (0) target = $region21
    $region20: #{tpu_custom_call.1} parent=1 // pred_region
      %43 = dma.done [#allocation5], 256
    $region21: #{tpu_custom_call.1} parent=1 // pred_fallthru
      _
    // Predicated region
    $region22: #{tpu_custom_call.1} parent=1 // pred_check
      _
    $region23: #{tpu_custom_call.1} parent=1 // pred_check_branch
      %45 = sbr.rel (0) target = $region25
    $region24: #{tpu_custom_call.1} parent=1 // pred_region
      %46 = dma.done [#allocation8], 256
    $region25: #{tpu_custom_call.1} parent=1 // pred_fallthru
      _
    %p47 = scmp.eq.s32.totalorder 0, 0
    // Predicated region
    $region26: #{tpu_custom_call.1} parent=1 // pred_check
      %p48 = pneg %p47
    $region27: #{tpu_custom_call.1} parent=1 // pred_check_branch
      %50 = sbr.rel (%p48) target = $region29
    $region28: #{tpu_custom_call.1} parent=1 // pred_region
      %51 = vst [vmem:[#allocation2] sm:$0xff] 0.0
    $region29: #{tpu_custom_call.1} parent=1 // pred_fallthru
      _
    %v52 = vld [vmem:[#allocation4] sm:$0xff]
    %v53 = vld [vmem:[#allocation7] sm:$0xff]
    %v54 = vsub.f32 %v52, %v53
    %v55 = vmul.f32 %v54, %v54
    %v56 = vadd.f32 %v55, 0.0
    %v57 = vld [vmem:[#allocation4 + $0x8] sm:$0xff]
    %v58 = vld [vmem:[#allocation7 + $0x8] sm:$0xff]
    %v59 = vsub.f32 %v57, %v58
    %v60 = vmul.f32 %v59, %v59
    %v61 = vadd.f32 %v56, %v60
    %v62 = vld [vmem:[#allocation2] sm:$0xff]
    %v63 = vadd.f32 %v62, %v61
    %64 = vst [vmem:[#allocation2] sm:$0xff] %v63
    // Predicated region
    $region30: #{tpu_custom_call.1} parent=1 // pred_check
      %p65 = pneg %p47
    $region31: #{tpu_custom_call.1} parent=1 // pred_check_branch
      %67 = sbr.rel (%p65) target = $region33
    $region32: #{tpu_custom_call.1} parent=1 // pred_region
      %v68 = vld [vmem:[#allocation2] sm:$0xff]
      %69 = vadd.xlane.f32.xlu0 %v68
      %v70 = vpop.xlane.xlu0 %69
      %v71 = vmul.f32 %v70, 0.00390625
      %vm72 = vcmask 7168
      %v73 = vsel %vm72, %v71, 0.0
      %74 = vadd.xlane.f32.xlu0 %v73
      %v75 = vpop.xlane.xlu0 %74
      %v76 = vrot.slane %v75, 4
      %v77 = vadd.f32 %v75, %v76
      %v78 = vrot.slane %v77, 2
      %v79 = vadd.f32 %v77, %v78
      %v80 = vrot.slane %v79, 1
      %v81 = vadd.f32 %v79, %v80
      %s82 = vtos %v81
      %s83 = smul.f32 %s82, 0.125
      %v84 = vld [vmem:[%s0] sm:$0xff]
      %vm85 = vcmp.eq.s32.totalorder %v84, 1
      %v86 = vsel %vm85, 1, 0
      %v87 = vcvt.s32.f32 %v86
      %vm88 = vcmp.gt.s32.totalorder %v84, 1
      %v89 = vsel %vm88, 1, 0
      %v90 = vcvt.s32.f32 %v89
      %v91 = vsel %vm72, %v87, 0.0
      %92 = vadd.xlane.f32.xlu0 %v91
      %v93 = vpop.xlane.xlu0 %92
      %v94 = vrot.slane %v93, 4
      %v95 = vadd.f32 %v93, %v94
      %v96 = vrot.slane %v95, 2
      %v97 = vadd.f32 %v95, %v96
      %v98 = vrot.slane %v97, 1
      %v99 = vadd.f32 %v97, %v98
      %s100 = vtos %v99
      %v101 = vsel %vm72, %v90, 0.0
      %102 = vadd.xlane.f32.xlu0 %v101
      %v103 = vpop.xlane.xlu0 %102
      %v104 = vrot.slane %v103, 4
      %v105 = vadd.f32 %v103, %v104
      %v106 = vrot.slane %v105, 2
      %v107 = vadd.f32 %v105, %v106
      %v108 = vrot.slane %v107, 1
      %v109 = vadd.f32 %v107, %v108
      %s110 = vtos %v109
      %v111 = vlaneseq
      %v112 = vshrl.u32 %v111, 7
      %v113 = vlaneseq
      %v114 = vand.u32 %v113, 127
      %vm115 = vcmp.eq.s32.totalorder %v112, %v114
      %v116 = vsel %vm115, 1, 0
      %v117 = vcvt.s32.f32 %v116
      %v118 = vmul.f32 %v71, %v117
      %vm119 = vcmask 64512
      %v120 = vsel %vm119, %v118, 0.0
      %v121 = vrot.slane %v120, 4
      %v122 = vadd.f32 %v120, %v121
      %v123 = vrot.slane %v122, 2
      %v124 = vadd.f32 %v122, %v123
      %v125 = vrot.slane %v124, 1
      %v126 = vadd.f32 %v124, %v125
      %128 = vset.pattern.permute.xlu0 0
      %129 = vperm.xlu0 %128, %v87
      %v130 = vpop.permute.xlu0 %129
      %v132 = vmul.f32 %v130, %v117
      %v133 = vsel %vm119, %v132, 0.0
      %v134 = vrot.slane %v133, 4
      %v135 = vadd.f32 %v133, %v134
      %v136 = vrot.slane %v135, 2
      %v137 = vadd.f32 %v135, %v136
      %v138 = vrot.slane %v137, 1
      %v139 = vadd.f32 %v137, %v138
      %v140 = vsub.f32 %v71, %v126
      %v141 = vsub.f32 0.0, %v140
      %v142 = vmul.f32 %v141, 1.442695
      %v143 = vpow.pop %v142
      %v144 = vadd.f32 %v143, 1.0
      %v145 = vrcp.pop %v144
      %147 = vset.pattern.permute.xlu0 0
      %148 = vperm.xlu0 %147, %v90
      %v149 = vpop.permute.xlu0 %148
      %v151 = vmul.f32 %v149, %v139
      %v152 = vmul.f32 %v151, %v145
      %v153 = vsel %vm119, %v152, 0.0
      %154 = vadd.xlane.f32.xlu0 %v153
      %v155 = vpop.xlane.xlu0 %154
      %v156 = vrot.slane %v155, 4
      %v157 = vadd.f32 %v155, %v156
      %v158 = vrot.slane %v157, 2
      %v159 = vadd.f32 %v157, %v158
      %v160 = vrot.slane %v159, 1
      %v161 = vadd.f32 %v159, %v160
      %s162 = vtos %v161
      %s163 = sld [smem:[#allocation3]]
      %s164 = smul.f32 %s110, %s100
      %s165 = smax.f32 %s164, 1.0
      %p166 = scmp.gt.f32.partialorder %s110, 0.0
      %s167 = smul.f32 %s163, %s162
      %v168 = vstv %s165
      %v169 = vrcp.pop %v168
      %s170 = vtos %v169
      %s171 = smul.f32 %s167, %s170
      %s172 = scalar_select %p166, %s171, 0.0
      %s173 = scalar_lea.smem [#allocation9], 0
      %174 = sst [smem:[%s173]] %s83
      %s175 = sadd.f32 %s83, %s172
      %s176 = scalar_lea.smem [#allocation10], 0
      %177 = sst [smem:[%s176]] %s175
      %s178 = scalar_lea.smem [#allocation12], 0
      %179 = sst [smem:[%s178]] %s110
    $region33: #{tpu_custom_call.1} parent=1 // pred_fallthru
      _
    // Predicated region
    $region34: #{tpu_custom_call.1} parent=1 // pred_check
      _
    $region35: #{tpu_custom_call.1} parent=1 // pred_check_branch
      %181 = sbr.rel (0) target = $region37
    $region36: #{tpu_custom_call.1} parent=1 // pred_region
      %s183 = ssub.s32 16, 16
      %184 = vsyncadd [#allocation6], %s183
      %187 = dma.smem_to_hbm [#allocation9], 16, %s4, [#allocation6]
    $region37: #{tpu_custom_call.1} parent=1 // pred_fallthru
      _
    // Predicated region
    $region38: #{tpu_custom_call.1} parent=1 // pred_check
      _
    $region39: #{tpu_custom_call.1} parent=1 // pred_check_branch
      %189 = sbr.rel (0) target = $region41
    $region40: #{tpu_custom_call.1} parent=1 // pred_region
      %s191 = ssub.s32 16, 16
      %192 = vsyncadd [#allocation11], %s191
      %195 = dma.smem_to_hbm [#allocation10], 16, %s5, [#allocation11]
    $region41: #{tpu_custom_call.1} parent=1 // pred_fallthru
      _
    // Predicated region
    $region42: #{tpu_custom_call.1} parent=1 // pred_check
      _
    $region43: #{tpu_custom_call.1} parent=1 // pred_check_branch
      %197 = sbr.rel (0) target = $region45
    $region44: #{tpu_custom_call.1} parent=1 // pred_region
      %s199 = ssub.s32 16, 16
      %200 = vsyncadd [#allocation11], %s199
      %203 = dma.smem_to_hbm [#allocation12], 16, %s6, [#allocation11]
    $region45: #{tpu_custom_call.1} parent=1 // pred_fallthru
      _
    // Predicated region
    $region46: #{tpu_custom_call.1} parent=1 // pred_check
      _
    $region47: #{tpu_custom_call.1} parent=1 // pred_check_branch
      %205 = sbr.rel (0) target = $region49
    $region48: #{tpu_custom_call.1} parent=1 // pred_region
      %206 = dma.done [#allocation6], 16
    $region49: #{tpu_custom_call.1} parent=1 // pred_fallthru
      _
    // Predicated region
    $region50: #{tpu_custom_call.1} parent=1 // pred_check
      _
    $region51: #{tpu_custom_call.1} parent=1 // pred_check_branch
      %208 = sbr.rel (0) target = $region53
    $region52: #{tpu_custom_call.1} parent=1 // pred_region
      %209 = dma.done [#allocation11], 16
    $region53: #{tpu_custom_call.1} parent=1 // pred_fallthru
      _
    // Predicated region
    $region54: #{tpu_custom_call.1} parent=1 // pred_check
      _
    $region55: #{tpu_custom_call.1} parent=1 // pred_check_branch
      %211 = sbr.rel (0) target = $region57
    $region56: #{tpu_custom_call.1} parent=1 // pred_region
      %212 = dma.done [#allocation11], 16
    $region57: #{tpu_custom_call.1} parent=1 // pred_fallthru
      _
    %213 = sfence
    %214 = vsyncpa [#allocation5], 1
    %215 = vsyncpa [#allocation8], 1
    %216 = vsyncpa [#allocation6], 1
    %217 = vsyncpa [#allocation11], 1

</llo_original>
